<compile_context>
chip_gen: v5e
topology: v5e:2x2
jax: 0.10.0
libtpu: 0.0.40
codegen_flags: <defaults>
</compile_context>

<pallas_src>
import functools

import numpy as np
import jax
import jax.numpy as jnp
from jax import lax
from jax.experimental import pallas as pl
from jax.experimental.pallas import tpu as pltpu


def _round_up(x, m):
    return (x + m - 1) // m * m


def _pick_row_block(batch, max_block=1024):
    """Row block for the batch grid.

    * multiple of 8 (sublane), capped at max_block (overhead-amortizing sweet
      spot; VMEM stays well under the scoped default on all generations).
    * for non-tiny batches, guarantee >= 2 grid steps so both v7x TensorCores
      get work under dimension_semantics=('parallel',).
    The wrapper pads the batch to grid*bm, so no divisibility is required.
    """
    if batch <= 16:
        return _round_up(batch, 8)
    half = _round_up((batch + 1) // 2, 8)
    return min(max_block, half)


# ----------------------------------------------------------------------------
# Trace-time weight packing
# ----------------------------------------------------------------------------
def _conv3x3_as_dense(weight, stride, hin, win):
    """Fold Conv2d(3x3, pad=1, stride=s) into a dense matrix acting on the
    NCHW-flattened per-sample feature vector.

    Row index    i = cin*Hin*Win + hin*Win + win   (== torch NCHW flatten)
    Column index j = cout*Hout*Wout + ho*Wout + wo (== torch NCHW flatten)
    Zero padding is encoded by all-zero selector rows (exact one-hot folds)."""
    cout, cin, _, _ = weight.shape
    hout = (hin + 2 - 3) // stride + 1
    wout = (win + 2 - 3) // stride + 1
    sel_h = np.zeros((3, hin, hout), np.float32)
    sel_w = np.zeros((3, win, wout), np.float32)
    for k in range(3):
        for p in range(hout):
            h = p * stride + k - 1
            if 0 <= h < hin:
                sel_h[k, h, p] = 1.0
        for q in range(wout):
            w = q * stride + k - 1
            if 0 <= w < win:
                sel_w[k, w, q] = 1.0
    dense = jnp.einsum(
        "oikl,khp,lwq->ihwopq",
        weight.astype(jnp.float32), jnp.asarray(sel_h), jnp.asarray(sel_w),
        precision=lax.Precision.HIGHEST)          # exact: one-hot selectors
    dense = dense.reshape(cin * hin * win, cout * hout * wout)
    return dense, hout, wout


def pack_params(params, in_hw, compute_dtype=jnp.bfloat16):
    """One-time weight preprocessing for the fused forward kernel.

    Weights (GEMM matrices) are stored in `compute_dtype` (bf16 default for
    full-rate MXU on v5e/v6e/v7x); biases / critic weight stay f32 (epilogue
    and the critic reduction are always f32)."""
    hin, win = in_hw
    m1, h1, w1 = _conv3x3_as_dense(params["conv1_w"], 2, hin, win)
    m2, h2, w2 = _conv3x3_as_dense(params["conv2_w"], 2, h1, w1)
    m3, h3, w3 = _conv3x3_as_dense(params["conv3_w"], 1, h2, w2)

    mfc = params["fc_w"].astype(jnp.float32)       # (flat_size, hidden)
    assert mfc.shape[0] == m3.shape[1], "flat_size mismatch"
    hidden = mfc.shape[1]
    out_w = max(128, _round_up(hidden + 1, 128))   # lane-dense output slab

    # Lane-dense column widths; pad the next stage's rows to match.  Pad
    # weights/biases with zeros so ReLU keeps all pad lanes exactly 0.
    n1 = _round_up(m1.shape[1], 128)
    n2 = _round_up(m2.shape[1], 128)
    n3 = _round_up(m3.shape[1], 128)

    def pad_to(m, rows, cols):
        return jnp.pad(m, ((0, rows - m.shape[0]), (0, cols - m.shape[1])))

    m1p = pad_to(m1, m1.shape[0], n1)
    m2p = pad_to(m2, n1, n2)
    m3p = pad_to(m3, n2, n3)
    mfcp = pad_to(mfc, n3, out_w)

    def bias_row(b, spatial, width):               # bias[c] at column c*P + p
        row = jnp.repeat(b.astype(jnp.float32), spatial).reshape(1, -1)
        return jnp.pad(row, ((0, 0), (0, width - row.shape[1])))

    b1 = bias_row(params["conv1_b"], h1 * w1, n1)
    b2 = bias_row(params["conv2_b"], h2 * w2, n2)
    b3 = bias_row(params["conv3_b"], h3 * w3, n3)
    bfc = jnp.pad(params["fc_b"].reshape(1, -1).astype(jnp.float32),
                  ((0, 0), (0, out_w - hidden)))
    wcrit = jnp.pad(params["critic_w"].reshape(1, -1).astype(jnp.float32),
                    ((0, 0), (0, out_w - hidden)))

    # One lane-dense f32 row slab: [b1 | b2 | b3 | bfc | wcrit]
    row_slab = jnp.concatenate([b1, b2, b3, bfc, wcrit], axis=1)
    seg = tuple(int(s) for s in np.cumsum([n1, n2, n3, out_w, out_w]))

    return {
        "mats": [m.astype(compute_dtype) for m in (m1p, m2p, m3p, mfcp)],
        "row_slab": row_slab,
        "bcrit": params["critic_b"].reshape(1, 1).astype(jnp.float32),
        "seg": seg,
        "hidden": hidden,
        "in_features": m1.shape[0],
        "out_width": out_w,
        "compute_dtype": compute_dtype,
    }


# ----------------------------------------------------------------------------
# Fused kernel: conv1+conv2+conv3+fc (as GEMMs) + critic head, all in VMEM
# ----------------------------------------------------------------------------
def _actor_critic_kernel(x_ref, m1_ref, m2_ref, m3_ref, mfc_ref, row_ref,
                         bc_ref, o_ref, *, hidden, seg):
    o1, o2, o3, o4, o5 = seg

    def gemm_bias_relu(h, m_ref, bias):
        y = jnp.dot(h.astype(m_ref.dtype), m_ref[...],
                    preferred_element_type=jnp.float32)    # MXU, f32 accum
        return jnp.maximum(y + bias, 0.0)                   # f32 VPU epilogue

    h = x_ref[...]                                           # (BM, Cin*H*W)
    h = gemm_bias_relu(h, m1_ref, row_ref[:, 0:o1])          # conv1 + ReLU
    h = gemm_bias_relu(h, m2_ref, row_ref[:, o1:o2])         # conv2 + ReLU
    h = gemm_bias_relu(h, m3_ref, row_ref[:, o2:o3])         # conv3 + ReLU
    feats = gemm_bias_relu(h, mfc_ref, row_ref[:, o3:o4])    # fc + ReLU -> (BM, out_w)
    # feats lanes [hidden:out_w) are exactly 0 (zero-padded weights/bias + ReLU)

    # critic_linear folded in: VPU multiply + lane reduce; pad lanes are zero
    # in both feats and the padded critic weight, so the sum is exact.
    value = jnp.sum(feats * row_ref[:, o4:o5], axis=-1, keepdims=True) + bc_ref[0, 0]

    # insert the value into the (zero) pad lane `hidden` -> single unmasked
    # lane-dense store, no zeros materialization, no concat shuffles.
    lane = lax.broadcasted_iota(jnp.int32, feats.shape, 1)
    o_ref[...] = jnp.where(lane == hidden, value, feats).astype(o_ref.dtype)


def actor_critic_forward(packed, inputs, rnn_hxs, masks):
    """Fused CNNBase_NEW forward: returns (value, actor_features, rnn_hxs)."""
    del masks  # non-recurrent: masks unused
    batch = inputs.shape[0]
    hidden = packed["hidden"]
    out_w = packed["out_width"]
    mats = packed["mats"]

    # torch NCHW .view flatten; input activations carried in compute dtype.
    x2d = inputs.reshape(batch, -1).astype(packed["compute_dtype"])
    assert x2d.shape[1] == packed["in_features"]

    bm = _pick_row_block(batch)
    grid_n = -(-batch // bm)
    padded = grid_n * bm
    if padded != batch:
        x2d = jnp.pad(x2d, ((0, padded - batch), (0, 0)))

    kernel = functools.partial(_actor_critic_kernel,
                               hidden=hidden, seg=packed["seg"])

    in_specs = [
        pl.BlockSpec((bm, x2d.shape[1]), lambda i: (i, 0)),      # batch-tiled
        pl.BlockSpec(mats[0].shape, lambda i: (0, 0)),           # weights
        pl.BlockSpec(mats[1].shape, lambda i: (0, 0)),           #   resident
        pl.BlockSpec(mats[2].shape, lambda i: (0, 0)),           #   across
        pl.BlockSpec(mats[3].shape, lambda i: (0, 0)),           #   the grid
        pl.BlockSpec(packed["row_slab"].shape, lambda i: (0, 0)),
        pl.BlockSpec(memory_space=pltpu.SMEM),                   # critic bias scalar
    ]

    flops = 2 * padded * (sum(m.shape[0] * m.shape[1] for m in mats) + out_w)
    bytes_accessed = (int(x2d.size) * x2d.dtype.itemsize
                      + padded * out_w * 4
                      + sum(int(m.size) * m.dtype.itemsize for m in mats)
                      + int(packed["row_slab"].size) * 4 + 4)

    out = pl.pallas_call(
        kernel,
        out_shape=jax.ShapeDtypeStruct((padded, out_w), jnp.float32),
        grid=(grid_n,),
        in_specs=in_specs,
        out_specs=pl.BlockSpec((bm, out_w), lambda i: (i, 0)),
        compiler_params=pltpu.CompilerParams(
            dimension_semantics=("parallel",)),
        cost_estimate=pl.CostEstimate(flops=int(flops), transcendentals=0,
                                      bytes_accessed=int(bytes_accessed)),
    )(x2d, *mats, packed["row_slab"], packed["bcrit"])

    value = out[:batch, hidden:hidden + 1]
    actor_features = out[:batch, :hidden]
    return value, actor_features, rnn_hxs


# ----------------------------------------------------------------------------
# Deterministic synthetic parameters (shapes from CNNBase_NEW.__init__, MiniGrid)
# ----------------------------------------------------------------------------
def init_params(key, num_inputs, hidden_size):
    ks = jax.random.split(key, 5)

    def w(k, shape, scale=0.1):
        return scale * jax.random.normal(k, shape, jnp.float32)

    return {
        "conv1_w": w(ks[0], (8, num_inputs, 3, 3)),
        "conv1_b": jnp.zeros((8,), jnp.float32),
        "conv2_w": w(ks[1], (8, 8, 3, 3)),
        "conv2_b": jnp.zeros((8,), jnp.float32),
        "conv3_w": w(ks[2], (16, 8, 3, 3)),
        "conv3_b": jnp.zeros((16,), jnp.float32),
        "fc_w": w(ks[3], (16 * 3 * 3, hidden_size)),
        "fc_b": jnp.zeros((hidden_size,), jnp.float32),
        "critic_w": w(ks[4], (hidden_size, 1)),
        "critic_b": jnp.zeros((1,), jnp.float32),
    }


# ----------------------------------------------------------------------------
# Pure-JAX reference (mirrors the PyTorch forward) for correctness checking
# ----------------------------------------------------------------------------
def reference_forward(params, inputs, rnn_hxs, masks):
    del masks
    x = inputs.astype(jnp.float32)

    def conv(x, w, b, s):
        y = lax.conv_general_dilated(
            x, w, window_strides=(s, s), padding=((1, 1), (1, 1)),
            dimension_numbers=("NCHW", "OIHW", "NCHW"),
            precision=lax.Precision.HIGHEST)
        return jnp.maximum(y + b.reshape(1, -1, 1, 1), 0.0)

    x = conv(x, params["conv1_w"], params["conv1_b"], 2)
    x = conv(x, params["conv2_w"], params["conv2_b"], 2)
    x = conv(x, params["conv3_w"], params["conv3_b"], 1)
    x = x.reshape(x.shape[0], -1)
    x = jnp.maximum(
        jnp.dot(x, params["fc_w"], precision=lax.Precision.HIGHEST)
        + params["fc_b"], 0.0)
    value = (jnp.dot(x, params["critic_w"], precision=lax.Precision.HIGHEST)
             + params["critic_b"])
    return value, x, rnn_hxs


if __name__ == "__main__":
    key = jax.random.PRNGKey(0)
    k_in, k_p = jax.random.split(key)

    # MiniGrid branch: 12x12 -> 6 -> 3 -> 3, flat_size = 16*3*3 = 144
    B, C, H, W = 2, 4, 12, 12
    hidden_size = 32                 # args.state_encoder_hidden_size

    inputs = jax.random.uniform(k_in, (B, C, H, W), jnp.float32)
    rnn_hxs = jnp.zeros((B, 1), jnp.float32)   # recurrent_hidden_state_size == 1
    masks = jnp.ones((B, 1), jnp.float32)

    params = init_params(k_p, C, hidden_size)
    v_ref, f_ref, _ = reference_forward(params, inputs, rnn_hxs, masks)

    # --- f32 weights: exact-semantics check (tight tolerance) ---------------
    packed_f32 = pack_params(params, (H, W), compute_dtype=jnp.float32)
    fwd_f32 = jax.jit(functools.partial(actor_critic_forward, packed_f32))
    value, actor_features, rnn_hxs_out = fwd_f32(inputs, rnn_hxs, masks)
    jax.block_until_ready((value, actor_features, rnn_hxs_out))

    assert value.shape == (B, 1)
    assert actor_features.shape == (B, hidden_size)
    assert rnn_hxs_out.shape == (B, 1)
    assert bool(jnp.allclose(value, v_ref, rtol=2e-2, atol=5e-3))
    assert bool(jnp.allclose(actor_features, f_ref, rtol=2e-2, atol=5e-3))

    # --- bf16 weights (production default): looser tolerance ---------------
    packed_bf16 = pack_params(params, (H, W))   # compute_dtype=bfloat16 default
    fwd_bf16 = jax.jit(functools.partial(actor_critic_forward, packed_bf16))
    value_b, feats_b, _ = fwd_bf16(inputs, rnn_hxs, masks)
    jax.block_until_ready((value_b, feats_b))

    assert bool(jnp.allclose(value_b, v_ref, rtol=3e-2, atol=2e-2))
    assert bool(jnp.allclose(feats_b, f_ref, rtol=3e-2, atol=2e-2))

    print("KERNEL_OK")
</pallas_src>

<mosaic_0001>
module attributes {stable_mosaic.version = 11 : i64} {
  func.func @_actor_critic_kernel(%arg0: i32, %arg1: memref<8x576xf32, #tpu.memory_space<vmem>>, %arg2: memref<576x384xf32, #tpu.memory_space<vmem>>, %arg3: memref<384x128xf32, #tpu.memory_space<vmem>>, %arg4: memref<128x256xf32, #tpu.memory_space<vmem>>, %arg5: memref<256x128xf32, #tpu.memory_space<vmem>>, %arg6: memref<1x1024xf32, #tpu.memory_space<vmem>>, %arg7: memref<1x1xf32, #tpu.memory_space<smem>>, %arg8: memref<8x128xf32, #tpu.memory_space<vmem>>) attributes {dimension_semantics = [#tpu.dimension_semantics<parallel>], iteration_bounds = array<i64: 1>, scalar_prefetch = 0 : i64, scratch_operands = 0 : i64, tpu.core_type = #tpu.core_type<tc>, window_params = [{transform_indices = @transform_0, window_bounds = array<i64: 8, 576>}, {pipeline_mode = #tpu.pipeline_mode<synchronous>, transform_indices = @transform_1, window_bounds = array<i64: 576, 384>}, {pipeline_mode = #tpu.pipeline_mode<synchronous>, transform_indices = @transform_2, window_bounds = array<i64: 384, 128>}, {pipeline_mode = #tpu.pipeline_mode<synchronous>, transform_indices = @transform_3, window_bounds = array<i64: 128, 256>}, {pipeline_mode = #tpu.pipeline_mode<synchronous>, transform_indices = @transform_4, window_bounds = array<i64: 256, 128>}, {pipeline_mode = #tpu.pipeline_mode<synchronous>, transform_indices = @transform_5, window_bounds = array<i64: 1, 1024>}, {transform_indices = @transform_6, window_bounds = array<i64: 1, 1>}, {transform_indices = @transform_7, window_bounds = array<i64: 8, 128>}]} {
    %c0 = arith.constant 0 : index
    %c0_0 = arith.constant 0 : index
    %0 = vector.load %arg1[%c0, %c0_0] : memref<8x576xf32, #tpu.memory_space<vmem>>, vector<8x576xf32>
    %c0_1 = arith.constant 0 : index
    %c0_2 = arith.constant 0 : index
    %1 = vector.load %arg6[%c0_1, %c0_2] : memref<1x1024xf32, #tpu.memory_space<vmem>>, vector<1x384xf32>
    %c0_3 = arith.constant 0 : index
    %c0_4 = arith.constant 0 : index
    %2 = vector.load %arg2[%c0_3, %c0_4] : memref<576x384xf32, #tpu.memory_space<vmem>>, vector<576x384xf32>
    %cst = arith.constant dense<0.000000e+00> : vector<8x384xf32>
    %3 = tpu.matmul %0, %2, %cst {dimension_numbers = #tpu.dot_dimension_numbers<[1], [0], [0], [1], [0, 0, 1, 1], [], []>} : vector<8x576xf32>, vector<576x384xf32>, vector<8x384xf32> -> vector<8x384xf32>
    %4 = vector.broadcast %1 : vector<1x384xf32> to vector<8x384xf32>
    %5 = arith.addf %3, %4 : vector<8x384xf32>
    %cst_5 = arith.constant 0.000000e+00 : f32
    %6 = vector.broadcast %cst_5 : f32 to vector<8x384xf32>
    %7 = arith.maximumf %5, %6 : vector<8x384xf32>
    %c0_6 = arith.constant 0 : index
    %c384 = arith.constant 384 : index
    %8 = vector.load %arg6[%c0_6, %c384] : memref<1x1024xf32, #tpu.memory_space<vmem>>, vector<1x128xf32>
    %c0_7 = arith.constant 0 : index
    %c0_8 = arith.constant 0 : index
    %9 = vector.load %arg3[%c0_7, %c0_8] : memref<384x128xf32, #tpu.memory_space<vmem>>, vector<384x128xf32>
    %cst_9 = arith.constant dense<0.000000e+00> : vector<8x128xf32>
    %10 = tpu.matmul %7, %9, %cst_9 {dimension_numbers = #tpu.dot_dimension_numbers<[1], [0], [0], [1], [0, 0, 1, 1], [], []>} : vector<8x384xf32>, vector<384x128xf32>, vector<8x128xf32> -> vector<8x128xf32>
    %11 = vector.broadcast %8 : vector<1x128xf32> to vector<8x128xf32>
    %12 = arith.addf %10, %11 : vector<8x128xf32>
    %cst_10 = arith.constant 0.000000e+00 : f32
    %13 = vector.broadcast %cst_10 : f32 to vector<8x128xf32>
    %14 = arith.maximumf %12, %13 : vector<8x128xf32>
    %c0_11 = arith.constant 0 : index
    %c512 = arith.constant 512 : index
    %15 = vector.load %arg6[%c0_11, %c512] : memref<1x1024xf32, #tpu.memory_space<vmem>>, vector<1x256xf32>
    %c0_12 = arith.constant 0 : index
    %c0_13 = arith.constant 0 : index
    %16 = vector.load %arg4[%c0_12, %c0_13] : memref<128x256xf32, #tpu.memory_space<vmem>>, vector<128x256xf32>
    %cst_14 = arith.constant dense<0.000000e+00> : vector<8x256xf32>
    %17 = tpu.matmul %14, %16, %cst_14 {dimension_numbers = #tpu.dot_dimension_numbers<[1], [0], [0], [1], [0, 0, 1, 1], [], []>} : vector<8x128xf32>, vector<128x256xf32>, vector<8x256xf32> -> vector<8x256xf32>
    %18 = vector.broadcast %15 : vector<1x256xf32> to vector<8x256xf32>
    %19 = arith.addf %17, %18 : vector<8x256xf32>
    %cst_15 = arith.constant 0.000000e+00 : f32
    %20 = vector.broadcast %cst_15 : f32 to vector<8x256xf32>
    %21 = arith.maximumf %19, %20 : vector<8x256xf32>
    %c0_16 = arith.constant 0 : index
    %c768 = arith.constant 768 : index
    %22 = vector.load %arg6[%c0_16, %c768] : memref<1x1024xf32, #tpu.memory_space<vmem>>, vector<1x128xf32>
    %c0_17 = arith.constant 0 : index
    %c0_18 = arith.constant 0 : index
    %23 = vector.load %arg5[%c0_17, %c0_18] : memref<256x128xf32, #tpu.memory_space<vmem>>, vector<256x128xf32>
    %cst_19 = arith.constant dense<0.000000e+00> : vector<8x128xf32>
    %24 = tpu.matmul %21, %23, %cst_19 {dimension_numbers = #tpu.dot_dimension_numbers<[1], [0], [0], [1], [0, 0, 1, 1], [], []>} : vector<8x256xf32>, vector<256x128xf32>, vector<8x128xf32> -> vector<8x128xf32>
    %25 = vector.broadcast %22 : vector<1x128xf32> to vector<8x128xf32>
    %26 = arith.addf %24, %25 : vector<8x128xf32>
    %cst_20 = arith.constant 0.000000e+00 : f32
    %27 = vector.broadcast %cst_20 : f32 to vector<8x128xf32>
    %28 = arith.maximumf %26, %27 : vector<8x128xf32>
    %c0_21 = arith.constant 0 : index
    %c896 = arith.constant 896 : index
    %29 = vector.load %arg6[%c0_21, %c896] : memref<1x1024xf32, #tpu.memory_space<vmem>>, vector<1x128xf32>
    %30 = vector.broadcast %29 : vector<1x128xf32> to vector<8x128xf32>
    %31 = arith.mulf %28, %30 : vector<8x128xf32>
    %cst_22 = arith.constant dense<0.000000e+00> : vector<8xf32>
    %32 = vector.multi_reduction <add>, %31, %cst_22 [1] : vector<8x128xf32> to vector<8xf32>
    %33 = vector.shape_cast %32 : vector<8xf32> to vector<8x1xf32>
    %c0_23 = arith.constant 0 : index
    %c0_24 = arith.constant 0 : index
    %34 = memref.load %arg7[%c0_23, %c0_24] : memref<1x1xf32, #tpu.memory_space<smem>>
    %35 = vector.broadcast %34 : f32 to vector<8x1xf32>
    %36 = arith.addf %33, %35 : vector<8x1xf32>
    %37 = tpu.iota {dimensions = array<i32: 1>} : vector<8x128xi32>
    %c32_i32 = arith.constant 32 : i32
    %38 = vector.broadcast %c32_i32 : i32 to vector<8x128xi32>
    %39 = arith.cmpi eq, %37, %38 : vector<8x128xi32>
    %40 = vector.shape_cast %36 : vector<8x1xf32> to vector<8x1xf32>
    %41 = vector.broadcast %40 : vector<8x1xf32> to vector<8x128xf32>
    %42 = arith.select %39, %41, %28 : vector<8x128xi1>, vector<8x128xf32>
    %c0_25 = arith.constant 0 : index
    %c0_26 = arith.constant 0 : index
    %43 = vector.load %arg8[%c0_25, %c0_26] : memref<8x128xf32, #tpu.memory_space<vmem>>, vector<8x128xf32>
    tpu.vector_store %arg8[%c0_25, %c0_26], %42 {strides = array<i32>} : memref<8x128xf32, #tpu.memory_space<vmem>>, vector<8x128xf32>,
    return
  }
  func.func @transform_0(%arg0: i32) -> (i32, i32) {
    %c0_i32 = arith.constant 0 : i32
    %c0_i32_0 = arith.constant 0 : i32
    return %arg0, %c0_i32 : i32, i32
  }
  func.func @transform_1(%arg0: i32) -> (i32, i32) {
    %c0_i32 = arith.constant 0 : i32
    %c0_i32_0 = arith.constant 0 : i32
    %c0_i32_1 = arith.constant 0 : i32
    return %c0_i32, %c0_i32_0 : i32, i32
  }
  func.func @transform_2(%arg0: i32) -> (i32, i32) {
    %c0_i32 = arith.constant 0 : i32
    %c0_i32_0 = arith.constant 0 : i32
    %c0_i32_1 = arith.constant 0 : i32
    return %c0_i32, %c0_i32_0 : i32, i32
  }
  func.func @transform_3(%arg0: i32) -> (i32, i32) {
    %c0_i32 = arith.constant 0 : i32
    %c0_i32_0 = arith.constant 0 : i32
    %c0_i32_1 = arith.constant 0 : i32
    return %c0_i32, %c0_i32_0 : i32, i32
  }
  func.func @transform_4(%arg0: i32) -> (i32, i32) {
    %c0_i32 = arith.constant 0 : i32
    %c0_i32_0 = arith.constant 0 : i32
    %c0_i32_1 = arith.constant 0 : i32
    return %c0_i32, %c0_i32_0 : i32, i32
  }
  func.func @transform_5(%arg0: i32) -> (i32, i32) {
    %c0_i32 = arith.constant 0 : i32
    %c0_i32_0 = arith.constant 0 : i32
    %c0_i32_1 = arith.constant 0 : i32
    return %c0_i32, %c0_i32_0 : i32, i32
  }
  func.func @transform_6(%arg0: i32) -> (i32, i32) {
    %c0_i32 = arith.constant 0 : i32
    %c0_i32_0 = arith.constant 0 : i32
    %c0_i32_1 = arith.constant 0 : i32
    return %c0_i32, %c0_i32_0 : i32, i32
  }
  func.func @transform_7(%arg0: i32) -> (i32, i32) {
    %c0_i32 = arith.constant 0 : i32
    %c0_i32_0 = arith.constant 0 : i32
    return %arg0, %c0_i32 : i32, i32
  }
}

</mosaic_0001>

<llo_original>
// kernel: actor_critic_forward.1
$region0: #{actor_critic_forward.1}
  #allocation0 [shape = 'u32[]', space=smem, size = 0x4, offset = 0x4, fixed_abs, tag = 'smem constant byte address 0x4 - core index']
  #allocation1 [shape = 'u32[72,128]{1,0:T(1,128)}', space=vmem, size = 0x9000, scoped, tag = 'internal scratch']
  #allocation2 [shape = 'f32[1,1]{1,0:T(1,128)S(6)}', space=smem, size = 0x200, scoped, tag = 'scoped memory for actor_critic_forward.1']
  %s0 = inlined_call_operand.vmem [shape: f32[8,576], index: 0, kind: input, shape index: {}]
  %s1 = inlined_call_operand.hbm [shape: f32[576,384], index: 1, kind: input, shape index: {}]
  %s2 = inlined_call_operand.vmem [shape: f32[384,128], index: 2, kind: input, shape index: {}]
  %s3 = inlined_call_operand.hbm [shape: f32[128,256], index: 3, kind: input, shape index: {}]
  %s4 = inlined_call_operand.hbm [shape: f32[256,128], index: 4, kind: input, shape index: {}]
  %s5 = inlined_call_operand.vmem [shape: f32[1,1024], index: 5, kind: input, shape index: {}]
  %s6 = inlined_call_operand.<no memory space> [shape: f32[1,1], index: 6, kind: input, shape index: {}]
  %s7 = inlined_call_operand.vmem [shape: f32[8,128], index: 7, kind: output, shape index: {}]
  %s8 = sld [smem:[#allocation0]]
  $region50: #{actor_critic_forward.1} parent=0
    _
  %s10 = ssub.s32 1, %s8
  %s11 = scalar_select 0, %s10, %s8
  %12 = sst [smem:[#allocation2]] %s6
  $region1: #{actor_critic_forward.1} parent=0
    #allocation3 [shape = 'u8[884736]{0}', space=vmem, size = 0xd8000, scoped, tag = 'input window, operand 1, single buffered']
    #allocation4 [shape = 's32[1]{0}', space=sflag, size = 0x4, scoped, tag = 'scoped memory for actor_critic_forward.1']
    #allocation5 [shape = 'u8[131072]{0}', space=vmem, size = 0x20000, scoped, tag = 'input window, operand 3, single buffered']
    #allocation6 [shape = 's32[1]{0}', space=sflag, size = 0x4, scoped, tag = 'scoped memory for actor_critic_forward.1']
    #allocation7 [shape = 'u8[131072]{0}', space=vmem, size = 0x20000, scoped, tag = 'input window, operand 4, single buffered']
    %13 = vsyncpa [#allocation4], 0
    %14 = vsyncpa [#allocation6], 0
    // Predicated region
    $region2: #{actor_critic_forward.1} parent=1 // pred_check
      _
    $region3: #{actor_critic_forward.1} parent=1 // pred_check_branch
      %16 = sbr.rel (0) target = $region5
    $region4: #{actor_critic_forward.1} parent=1 // pred_region
      _
    $region5: #{actor_critic_forward.1} parent=1 // pred_fallthru
      _
    // Predicated region
    $region6: #{actor_critic_forward.1} parent=1 // pred_check
      _
    $region7: #{actor_critic_forward.1} parent=1 // pred_check_branch
      %18 = sbr.rel (0) target = $region9
    $region8: #{actor_critic_forward.1} parent=1 // pred_region
      %20 = vsyncadd [#allocation4], 0
      %s21 = sshll.u32 %s1, 4
      %s22 = int_to_ptr.hbm [resolvable:$true] %s21
      %s23 = sshll.u32 [#allocation3], 4
      %s24 = int_to_ptr.vmem [resolvable:$true] %s23
      %29 = dma.hbm_to_vmem [thread:$0]  %s22, 27648, %s24, [#allocation4], 384, 384, 24
    $region9: #{actor_critic_forward.1} parent=1 // pred_fallthru
      _
    // Predicated region
    $region10: #{actor_critic_forward.1} parent=1 // pred_check
      _
    $region11: #{actor_critic_forward.1} parent=1 // pred_check_branch
      %31 = sbr.rel (0) target = $region13
    $region12: #{actor_critic_forward.1} parent=1 // pred_region
      _
    $region13: #{actor_critic_forward.1} parent=1 // pred_fallthru
      _
    // Predicated region
    $region14: #{actor_critic_forward.1} parent=1 // pred_check
      _
    $region15: #{actor_critic_forward.1} parent=1 // pred_check_branch
      %33 = sbr.rel (0) target = $region17
    $region16: #{actor_critic_forward.1} parent=1 // pred_region
      %35 = vsyncadd [#allocation6], 0
      %s36 = sshll.u32 %s3, 4
      %s37 = int_to_ptr.hbm [resolvable:$true] %s36
      %s38 = sshll.u32 [#allocation5], 4
      %s39 = int_to_ptr.vmem [resolvable:$true] %s38
      %44 = dma.hbm_to_vmem [thread:$0]  %s37, 4096, %s39, [#allocation6], 256, 256, 16
    $region17: #{actor_critic_forward.1} parent=1 // pred_fallthru
      _
    // Predicated region
    $region18: #{actor_critic_forward.1} parent=1 // pred_check
      _
    $region19: #{actor_critic_forward.1} parent=1 // pred_check_branch
      %46 = sbr.rel (0) target = $region21
    $region20: #{actor_critic_forward.1} parent=1 // pred_region
      %48 = vsyncadd [#allocation6], 0
      %s49 = sshll.u32 %s4, 4
      %s50 = int_to_ptr.hbm [resolvable:$true] %s49
      %s51 = sshll.u32 [#allocation7], 4
      %s52 = int_to_ptr.vmem [resolvable:$true] %s51
      %57 = dma.hbm_to_vmem [thread:$0]  %s50, 4096, %s52, [#allocation6], 128, 128, 8
    $region21: #{actor_critic_forward.1} parent=1 // pred_fallthru
      _
    // Predicated region
    $region22: #{actor_critic_forward.1} parent=1 // pred_check
      _
    $region23: #{actor_critic_forward.1} parent=1 // pred_check_branch
      %59 = sbr.rel (0) target = $region25
    $region24: #{actor_critic_forward.1} parent=1 // pred_region
      _
    $region25: #{actor_critic_forward.1} parent=1 // pred_fallthru
      _
    // Predicated region
    $region26: #{actor_critic_forward.1} parent=1 // pred_check
      _
    $region27: #{actor_critic_forward.1} parent=1 // pred_check_branch
      %61 = sbr.rel (0) target = $region29
    $region28: #{actor_critic_forward.1} parent=1 // pred_region
      _
    $region29: #{actor_critic_forward.1} parent=1 // pred_fallthru
      _
    // Predicated region
    $region30: #{actor_critic_forward.1} parent=1 // pred_check
      _
    $region31: #{actor_critic_forward.1} parent=1 // pred_check_branch
      %63 = sbr.rel (0) target = $region33
    $region32: #{actor_critic_forward.1} parent=1 // pred_region
      %65 = dma.done [#allocation4], 27648
    $region33: #{actor_critic_forward.1} parent=1 // pred_fallthru
      _
    // Predicated region
    $region34: #{actor_critic_forward.1} parent=1 // pred_check
      _
    $region35: #{actor_critic_forward.1} parent=1 // pred_check_branch
      %67 = sbr.rel (0) target = $region37
    $region36: #{actor_critic_forward.1} parent=1 // pred_region
      %69 = dma.done [#allocation6], 4096
    $region37: #{actor_critic_forward.1} parent=1 // pred_fallthru
      _
    // Predicated region
    $region38: #{actor_critic_forward.1} parent=1 // pred_check
      _
    $region39: #{actor_critic_forward.1} parent=1 // pred_check_branch
      %71 = sbr.rel (0) target = $region41
    $region40: #{actor_critic_forward.1} parent=1 // pred_region
      %73 = dma.done [#allocation6], 4096
    $region41: #{actor_critic_forward.1} parent=1 // pred_fallthru
      _
    %v74 = vld [vmem:[%s0] sm:$0xff]
    %v75 = vld [vmem:[%s0 + $0x8] sm:$0xff]
    %v76 = vld [vmem:[%s0 + $0x10] sm:$0xff]
    %v77 = vld [vmem:[%s0 + $0x18] sm:$0xff]
    %v78 = vld [vmem:[%s0 + $0x20] sm:$0xff]
    %v79 = vld [vmem:[%s5] sm:$0x7]
    %v80 = vld [vmem:[#allocation3] sm:$0xff]
    %v81 = vld [vmem:[#allocation3 + $0x8] sm:$0xff]
    %v82 = vld [vmem:[#allocation3 + $0x10] sm:$0xff]
    %v83 = vld [vmem:[#allocation3 + $0x18] sm:$0xff]
    %v84 = vld [vmem:[#allocation3 + $0x20] sm:$0xff]
    %v85 = vld [vmem:[#allocation3 + $0x28] sm:$0xff]
    %v86 = vld [vmem:[#allocation3 + $0x30] sm:$0xff]
    %v87 = vld [vmem:[#allocation3 + $0x38] sm:$0xff]
    %v88 = vld [vmem:[#allocation3 + $0x40] sm:$0xff]
    %v89 = vld [vmem:[#allocation3 + $0x48] sm:$0xff]
    %v90 = vld [vmem:[#allocation3 + $0x50] sm:$0xff]
    %v91 = vld [vmem:[#allocation3 + $0x58] sm:$0xff]
    %v92 = vld [vmem:[#allocation3 + $0x60] sm:$0xff]
    %v93 = vld [vmem:[#allocation3 + $0x68] sm:$0xff]
    %v94 = vld [vmem:[#allocation3 + $0x70] sm:$0xff]
    %v95 = vld [vmem:[#allocation3 + $0x78] sm:$0xff]
    %v96 = vld [vmem:[#allocation3 + $0x80] sm:$0xff]
    %v97 = vld [vmem:[#allocation3 + $0x88] sm:$0xff]
    %v98 = vld [vmem:[#allocation3 + $0x90] sm:$0xff]
    %v99 = vld [vmem:[#allocation3 + $0x98] sm:$0xff]
    %v100 = vld [vmem:[#allocation3 + $0xa0] sm:$0xff]
    %v101 = vld [vmem:[#allocation3 + $0xa8] sm:$0xff]
    %v102 = vld [vmem:[#allocation3 + $0xb0] sm:$0xff]
    %v103 = vld [vmem:[#allocation3 + $0xb8] sm:$0xff]
    %v104 = vld [vmem:[#allocation3 + $0xc0] sm:$0xff]
    %v105 = vld [vmem:[#allocation3 + $0xc8] sm:$0xff]
    %v106 = vld [vmem:[#allocation3 + $0xd0] sm:$0xff]
    %v107 = vld [vmem:[#allocation3 + $0xd8] sm:$0xff]
    %v108 = vld [vmem:[#allocation3 + $0xe0] sm:$0xff]
    %v109 = vld [vmem:[#allocation3 + $0xe8] sm:$0xff]
    %v110 = vld [vmem:[#allocation3 + $0xf0] sm:$0xff]
    %v111 = vld [vmem:[#allocation3 + $0xf8] sm:$0xff]
    %v112 = vld [vmem:[#allocation3 + $0x100] sm:$0xff]
    %v113 = vld [vmem:[#allocation3 + $0x108] sm:$0xff]
    %v114 = vld [vmem:[#allocation3 + $0x110] sm:$0xff]
    %v115 = vld [vmem:[#allocation3 + $0x118] sm:$0xff]
    %v116 = vld [vmem:[#allocation3 + $0x120] sm:$0xff]
    %v117 = vld [vmem:[#allocation3 + $0x128] sm:$0xff]
    %v118 = vld [vmem:[#allocation3 + $0x130] sm:$0xff]
    %v119 = vld [vmem:[#allocation3 + $0x138] sm:$0xff]
    %v120 = vld [vmem:[#allocation3 + $0x140] sm:$0xff]
    %v121 = vld [vmem:[#allocation3 + $0x148] sm:$0xff]
    %v122 = vld [vmem:[#allocation3 + $0x150] sm:$0xff]
    %v123 = vld [vmem:[#allocation3 + $0x158] sm:$0xff]
    %v124 = vld [vmem:[#allocation3 + $0x160] sm:$0xff]
    %v125 = vld [vmem:[#allocation3 + $0x168] sm:$0xff]
    %v126 = vld [vmem:[#allocation3 + $0x170] sm:$0xff]
    %v127 = vld [vmem:[#allocation3 + $0x178] sm:$0xff]
    %v128 = vld [vmem:[#allocation3 + $0x180] sm:$0xff]
    %v129 = vld [vmem:[#allocation3 + $0x188] sm:$0xff]
    %v130 = vld [vmem:[#allocation3 + $0x190] sm:$0xff]
    %v131 = vld [vmem:[#allocation3 + $0x198] sm:$0xff]
    %v132 = vld [vmem:[#allocation3 + $0x1a0] sm:$0xff]
    %v133 = vld [vmem:[#allocation3 + $0x1a8] sm:$0xff]
    %v134 = vld [vmem:[#allocation3 + $0x1b0] sm:$0xff]
    %v135 = vld [vmem:[#allocation3 + $0x1b8] sm:$0xff]
    %v136 = vld [vmem:[#allocation3 + $0x1c0] sm:$0xff]
    %v137 = vld [vmem:[#allocation3 + $0x1c8] sm:$0xff]
    %v138 = vld [vmem:[#allocation3 + $0x1d0] sm:$0xff]
    %v139 = vld [vmem:[#allocation3 + $0x1d8] sm:$0xff]
    %v140 = vld [vmem:[#allocation3 + $0x1e0] sm:$0xff]
    %v141 = vld [vmem:[#allocation3 + $0x1e8] sm:$0xff]
    %v142 = vld [vmem:[#allocation3 + $0x1f0] sm:$0xff]
    %v143 = vld [vmem:[#allocation3 + $0x1f8] sm:$0xff]
    %v144 = vld [vmem:[#allocation3 + $0x200] sm:$0xff]
    %v145 = vld [vmem:[#allocation3 + $0x208] sm:$0xff]
    %v146 = vld [vmem:[#allocation3 + $0x210] sm:$0xff]
    %v147 = vld [vmem:[#allocation3 + $0x218] sm:$0xff]
    %v148 = vld [vmem:[#allocation3 + $0x220] sm:$0xff]
    %v149 = vld [vmem:[#allocation3 + $0x228] sm:$0xff]
    %v150 = vld [vmem:[#allocation3 + $0x230] sm:$0xff]
    %v151 = vld [vmem:[#allocation3 + $0x238] sm:$0xff]
    %v152 = vld [vmem:[#allocation3 + $0x240] sm:$0xff]
    %v153 = vld [vmem:[#allocation3 + $0x248] sm:$0xff]
    %v154 = vld [vmem:[#allocation3 + $0x250] sm:$0xff]
    %v155 = vld [vmem:[#allocation3 + $0x258] sm:$0xff]
    %v156 = vld [vmem:[#allocation3 + $0x260] sm:$0xff]
    %v157 = vld [vmem:[#allocation3 + $0x268] sm:$0xff]
    %v158 = vld [vmem:[#allocation3 + $0x270] sm:$0xff]
    %v159 = vld [vmem:[#allocation3 + $0x278] sm:$0xff]
    %v160 = vld [vmem:[#allocation3 + $0x280] sm:$0xff]
    %v161 = vld [vmem:[#allocation3 + $0x288] sm:$0xff]
    %v162 = vld [vmem:[#allocation3 + $0x290] sm:$0xff]
    %v163 = vld [vmem:[#allocation3 + $0x298] sm:$0xff]
    %v164 = vld [vmem:[#allocation3 + $0x2a0] sm:$0xff]
    %v165 = vld [vmem:[#allocation3 + $0x2a8] sm:$0xff]
    %v166 = vld [vmem:[#allocation3 + $0x2b0] sm:$0xff]
    %v167 = vld [vmem:[#allocation3 + $0x2b8] sm:$0xff]
    %v168 = vld [vmem:[#allocation3 + $0x2c0] sm:$0xff]
    %v169 = vld [vmem:[#allocation3 + $0x2c8] sm:$0xff]
    %v170 = vld [vmem:[#allocation3 + $0x2d0] sm:$0xff]
    %v171 = vld [vmem:[#allocation3 + $0x2d8] sm:$0xff]
    %v172 = vld [vmem:[#allocation3 + $0x2e0] sm:$0xff]
    %v173 = vld [vmem:[#allocation3 + $0x2e8] sm:$0xff]
    %v174 = vld [vmem:[#allocation3 + $0x2f0] sm:$0xff]
    %v175 = vld [vmem:[#allocation3 + $0x2f8] sm:$0xff]
    %v176 = vld [vmem:[#allocation3 + $0x300] sm:$0xff]
    %v177 = vld [vmem:[#allocation3 + $0x308] sm:$0xff]
    %v178 = vld [vmem:[#allocation3 + $0x310] sm:$0xff]
    %v179 = vld [vmem:[#allocation3 + $0x318] sm:$0xff]
    %v180 = vld [vmem:[#allocation3 + $0x320] sm:$0xff]
    %v181 = vld [vmem:[#allocation3 + $0x328] sm:$0xff]
    %v182 = vld [vmem:[#allocation3 + $0x330] sm:$0xff]
    %v183 = vld [vmem:[#allocation3 + $0x338] sm:$0xff]
    %v184 = vld [vmem:[#allocation3 + $0x340] sm:$0xff]
    %v185 = vld [vmem:[#allocation3 + $0x348] sm:$0xff]
    %v186 = vld [vmem:[#allocation3 + $0x350] sm:$0xff]
    %v187 = vld [vmem:[#allocation3 + $0x358] sm:$0xff]
    %v188 = vld [vmem:[#allocation3 + $0x360] sm:$0xff]
    %v189 = vld [vmem:[#allocation3 + $0x368] sm:$0xff]
    %v190 = vld [vmem:[#allocation3 + $0x370] sm:$0xff]
    %v191 = vld [vmem:[#allocation3 + $0x378] sm:$0xff]
    %v192 = vld [vmem:[#allocation3 + $0x380] sm:$0xff]
    %v193 = vld [vmem:[#allocation3 + $0x388] sm:$0xff]
    %v194 = vld [vmem:[#allocation3 + $0x390] sm:$0xff]
    %v195 = vld [vmem:[#allocation3 + $0x398] sm:$0xff]
    %v196 = vld [vmem:[#allocation3 + $0x3a0] sm:$0xff]
    %v197 = vld [vmem:[#allocation3 + $0x3a8] sm:$0xff]
    %v198 = vld [vmem:[#allocation3 + $0x3b0] sm:$0xff]
    %v199 = vld [vmem:[#allocation3 + $0x3b8] sm:$0xff]
    %v200 = vld [vmem:[#allocation3 + $0x3c0] sm:$0xff]
    %v201 = vld [vmem:[#allocation3 + $0x3c8] sm:$0xff]
    %v202 = vld [vmem:[#allocation3 + $0x3d0] sm:$0xff]
    %v203 = vld [vmem:[#allocation3 + $0x3d8] sm:$0xff]
    %v204 = vld [vmem:[#allocation3 + $0x3e0] sm:$0xff]
    %v205 = vld [vmem:[#allocation3 + $0x3e8] sm:$0xff]
    %v206 = vld [vmem:[#allocation3 + $0x3f0] sm:$0xff]
    %v207 = vld [vmem:[#allocation3 + $0x3f8] sm:$0xff]
    %v208 = vld [vmem:[#allocation3 + $0x400] sm:$0xff]
    %v209 = vld [vmem:[#allocation3 + $0x408] sm:$0xff]
    %v210 = vld [vmem:[#allocation3 + $0x410] sm:$0xff]
    %v211 = vld [vmem:[#allocation3 + $0x418] sm:$0xff]
    %v212 = vld [vmem:[#allocation3 + $0x420] sm:$0xff]
    %v213 = vld [vmem:[#allocation3 + $0x428] sm:$0xff]
    %v214 = vld [vmem:[#allocation3 + $0x430] sm:$0xff]
    %v215 = vld [vmem:[#allocation3 + $0x438] sm:$0xff]
    %v216 = vld [vmem:[#allocation3 + $0x440] sm:$0xff]
    %v217 = vld [vmem:[#allocation3 + $0x448] sm:$0xff]
    %v218 = vld [vmem:[#allocation3 + $0x450] sm:$0xff]
    %v219 = vld [vmem:[#allocation3 + $0x458] sm:$0xff]
    %v220 = vld [vmem:[#allocation3 + $0x460] sm:$0xff]
    %v221 = vld [vmem:[#allocation3 + $0x468] sm:$0xff]
    %v222 = vld [vmem:[#allocation3 + $0x470] sm:$0xff]
    %v223 = vld [vmem:[#allocation3 + $0x478] sm:$0xff]
    %v224 = vld [vmem:[#allocation3 + $0x480] sm:$0xff]
    %v225 = vld [vmem:[#allocation3 + $0x488] sm:$0xff]
    %v226 = vld [vmem:[#allocation3 + $0x490] sm:$0xff]
    %v227 = vld [vmem:[#allocation3 + $0x498] sm:$0xff]
    %v228 = vld [vmem:[#allocation3 + $0x4a0] sm:$0xff]
    %v229 = vld [vmem:[#allocation3 + $0x4a8] sm:$0xff]
    %v230 = vld [vmem:[#allocation3 + $0x4b0] sm:$0xff]
    %v231 = vld [vmem:[#allocation3 + $0x4b8] sm:$0xff]
    %v232 = vld [vmem:[#allocation3 + $0x4c0] sm:$0xff]
    %v233 = vld [vmem:[#allocation3 + $0x4c8] sm:$0xff]
    %v234 = vld [vmem:[#allocation3 + $0x4d0] sm:$0xff]
    %v235 = vld [vmem:[#allocation3 + $0x4d8] sm:$0xff]
    %v236 = vld [vmem:[#allocation3 + $0x4e0] sm:$0xff]
    %v237 = vld [vmem:[#allocation3 + $0x4e8] sm:$0xff]
    %v238 = vld [vmem:[#allocation3 + $0x4f0] sm:$0xff]
    %v239 = vld [vmem:[#allocation3 + $0x4f8] sm:$0xff]
    %v240 = vld [vmem:[#allocation3 + $0x500] sm:$0xff]
    %v241 = vld [vmem:[#allocation3 + $0x508] sm:$0xff]
    %v242 = vld [vmem:[#allocation3 + $0x510] sm:$0xff]
    %v243 = vld [vmem:[#allocation3 + $0x518] sm:$0xff]
    %v244 = vld [vmem:[#allocation3 + $0x520] sm:$0xff]
    %v245 = vld [vmem:[#allocation3 + $0x528] sm:$0xff]
    %v246 = vld [vmem:[#allocation3 + $0x530] sm:$0xff]
    %v247 = vld [vmem:[#allocation3 + $0x538] sm:$0xff]
    %v248 = vld [vmem:[#allocation3 + $0x540] sm:$0xff]
    %v249 = vld [vmem:[#allocation3 + $0x548] sm:$0xff]
    %v250 = vld [vmem:[#allocation3 + $0x550] sm:$0xff]
    %v251 = vld [vmem:[#allocation3 + $0x558] sm:$0xff]
    %v252 = vld [vmem:[#allocation3 + $0x560] sm:$0xff]
    %v253 = vld [vmem:[#allocation3 + $0x568] sm:$0xff]
    %v254 = vld [vmem:[#allocation3 + $0x570] sm:$0xff]
    %v255 = vld [vmem:[#allocation3 + $0x578] sm:$0xff]
    %v256 = vld [vmem:[#allocation3 + $0x580] sm:$0xff]
    %v257 = vld [vmem:[#allocation3 + $0x588] sm:$0xff]
    %v258 = vld [vmem:[#allocation3 + $0x590] sm:$0xff]
    %v259 = vld [vmem:[#allocation3 + $0x598] sm:$0xff]
    %v260 = vld [vmem:[#allocation3 + $0x5a0] sm:$0xff]
    %v261 = vld [vmem:[#allocation3 + $0x5a8] sm:$0xff]
    %v262 = vld [vmem:[#allocation3 + $0x5b0] sm:$0xff]
    %v263 = vld [vmem:[#allocation3 + $0x5b8] sm:$0xff]
    %v264 = vld [vmem:[#allocation3 + $0x5c0] sm:$0xff]
    %v265 = vld [vmem:[#allocation3 + $0x5c8] sm:$0xff]
    %v266 = vld [vmem:[#allocation3 + $0x5d0] sm:$0xff]
    %v267 = vld [vmem:[#allocation3 + $0x5d8] sm:$0xff]
    %v268 = vld [vmem:[#allocation3 + $0x5e0] sm:$0xff]
    %v269 = vld [vmem:[#allocation3 + $0x5e8] sm:$0xff]
    %v270 = vld [vmem:[#allocation3 + $0x5f0] sm:$0xff]
    %v271 = vld [vmem:[#allocation3 + $0x5f8] sm:$0xff]
    %v272 = vld [vmem:[#allocation3 + $0x600] sm:$0xff]
    %v273 = vld [vmem:[#allocation3 + $0x608] sm:$0xff]
    %v274 = vld [vmem:[#allocation3 + $0x610] sm:$0xff]
    %v275 = vld [vmem:[#allocation3 + $0x618] sm:$0xff]
    %v276 = vld [vmem:[#allocation3 + $0x620] sm:$0xff]
    %v277 = vld [vmem:[#allocation3 + $0x628] sm:$0xff]
    %v278 = vld [vmem:[#allocation3 + $0x630] sm:$0xff]
    %v279 = vld [vmem:[#allocation3 + $0x638] sm:$0xff]
    %v280 = vld [vmem:[#allocation3 + $0x640] sm:$0xff]
    %v281 = vld [vmem:[#allocation3 + $0x648] sm:$0xff]
    %v282 = vld [vmem:[#allocation3 + $0x650] sm:$0xff]
    %v283 = vld [vmem:[#allocation3 + $0x658] sm:$0xff]
    %v284 = vld [vmem:[#allocation3 + $0x660] sm:$0xff]
    %v285 = vld [vmem:[#allocation3 + $0x668] sm:$0xff]
    %v286 = vld [vmem:[#allocation3 + $0x670] sm:$0xff]
    %v287 = vld [vmem:[#allocation3 + $0x678] sm:$0xff]
    %v288 = vld [vmem:[#allocation3 + $0x680] sm:$0xff]
    %v289 = vld [vmem:[#allocation3 + $0x688] sm:$0xff]
    %v290 = vld [vmem:[#allocation3 + $0x690] sm:$0xff]
    %v291 = vld [vmem:[#allocation3 + $0x698] sm:$0xff]
    %v292 = vld [vmem:[#allocation3 + $0x6a0] sm:$0xff]
    %v293 = vld [vmem:[#allocation3 + $0x6a8] sm:$0xff]
    %v294 = vld [vmem:[#allocation3 + $0x6b0] sm:$0xff]
    %v295 = vld [vmem:[#allocation3 + $0x6b8] sm:$0xff]
    %v297 = vperm.slane %v79, 0
    %v298 = vperm.slane %v79, 1
    %v299 = vperm.slane %v79, 2
    %vm303 = vcmask 523264
    %v305 = vsel %vm303, %v78, 0
    %307 = vmatpush.msra.mxu0 %v125
    %308 = vmatpush.msra.mxu0 %v122
    %309 = vmatpush.msra.mxu0 %v119
    %310 = vmatpush.msra.mxu0 %v116
    %311 = vmatpush.msra.mxu0 %v113
    %312 = vmatpush.msra.mxu0 %v110
    %313 = vmatpush.msra.mxu0 %v107
    %314 = vmatpush.msra.mxu0 %v104
    %315 = vmatpush.msra.mxu0 %v101
    %316 = vmatpush.msra.mxu0 %v98
    %317 = vmatpush.msra.mxu0 %v95
    %318 = vmatpush.msra.mxu0 %v92
    %319 = vmatpush.msra.mxu0 %v89
    %320 = vmatpush.msra.mxu0 %v86
    %321 = vmatpush.msra.mxu0 %v83
    %322 = vmatpush.msra.mxu0 %v80
    %323 = vmatmul.f32.gmra.mxu0 %v74
    %v324 = vpop.f32.mrf.mxu0
    %v325 = vadd.f32 %v297, %v324
    %326 = vdwg.mxu0
    %327 = vmatpush.msra.mxu0 %v173
    %328 = vmatpush.msra.mxu0 %v170
    %329 = vmatpush.msra.mxu0 %v167
    %330 = vmatpush.msra.mxu0 %v164
    %331 = vmatpush.msra.mxu0 %v161
    %332 = vmatpush.msra.mxu0 %v158
    %333 = vmatpush.msra.mxu0 %v155
    %334 = vmatpush.msra.mxu0 %v152
    %335 = vmatpush.msra.mxu0 %v149
    %336 = vmatpush.msra.mxu0 %v146
    %337 = vmatpush.msra.mxu0 %v143
    %338 = vmatpush.msra.mxu0 %v140
    %339 = vmatpush.msra.mxu0 %v137
    %340 = vmatpush.msra.mxu0 %v134
    %341 = vmatpush.msra.mxu0 %v131
    %342 = vmatpush.msra.mxu0 %v128
    %343 = vmatmul.f32.gmra.mxu0 %v75
    %v344 = vpop.f32.mrf.mxu0
    %v345 = vadd.f32 %v325, %v344
    %346 = vdwg.mxu0
    %347 = vmatpush.msra.mxu0 %v221
    %348 = vmatpush.msra.mxu0 %v218
    %349 = vmatpush.msra.mxu0 %v215
    %350 = vmatpush.msra.mxu0 %v212
    %351 = vmatpush.msra.mxu0 %v209
    %352 = vmatpush.msra.mxu0 %v206
    %353 = vmatpush.msra.mxu0 %v203
    %354 = vmatpush.msra.mxu0 %v200
    %355 = vmatpush.msra.mxu0 %v197
    %356 = vmatpush.msra.mxu0 %v194
    %357 = vmatpush.msra.mxu0 %v191
    %358 = vmatpush.msra.mxu0 %v188
    %359 = vmatpush.msra.mxu0 %v185
    %360 = vmatpush.msra.mxu0 %v182
    %361 = vmatpush.msra.mxu0 %v179
    %362 = vmatpush.msra.mxu0 %v176
    %363 = vmatmul.f32.gmra.mxu0 %v76
    %v364 = vpop.f32.mrf.mxu0
    %v365 = vadd.f32 %v345, %v364
    %366 = vdwg.mxu0
    %367 = vmatpush.msra.mxu0 %v269
    %368 = vmatpush.msra.mxu0 %v266
    %369 = vmatpush.msra.mxu0 %v263
    %370 = vmatpush.msra.mxu0 %v260
    %371 = vmatpush.msra.mxu0 %v257
    %372 = vmatpush.msra.mxu0 %v254
    %373 = vmatpush.msra.mxu0 %v251
    %374 = vmatpush.msra.mxu0 %v248
    %375 = vmatpush.msra.mxu0 %v245
    %376 = vmatpush.msra.mxu0 %v242
    %377 = vmatpush.msra.mxu0 %v239
    %378 = vmatpush.msra.mxu0 %v236
    %379 = vmatpush.msra.mxu0 %v233
    %380 = vmatpush.msra.mxu0 %v230
    %381 = vmatpush.msra.mxu0 %v227
    %382 = vmatpush.msra.mxu0 %v224
    %383 = vmatmul.f32.gmra.mxu0 %v77
    %v384 = vpop.f32.mrf.mxu0
    %v385 = vadd.f32 %v365, %v384
    %386 = vdwg.mxu0
    %387 = vmatpush.msra.mxu0 0.0
    %388 = vmatpush.msra.mxu0 0.0
    %389 = vmatpush.msra.mxu0 0.0
    %390 = vmatpush.msra.mxu0 0.0
    %391 = vmatpush.msra.mxu0 0.0
    %392 = vmatpush.msra.mxu0 0.0
    %393 = vmatpush.msra.mxu0 0.0
    %394 = vmatpush.msra.mxu0 0.0
    %395 = vmatpush.msra.mxu0 %v293
    %396 = vmatpush.msra.mxu0 %v290
    %397 = vmatpush.msra.mxu0 %v287
    %398 = vmatpush.msra.mxu0 %v284
    %399 = vmatpush.msra.mxu0 %v281
    %400 = vmatpush.msra.mxu0 %v278
    %401 = vmatpush.msra.mxu0 %v275
    %402 = vmatpush.msra.mxu0 %v272
    %403 = vmatmul.f32.gmra.mxu0 %v305
    %v404 = vpop.f32.mrf.mxu0
    %v405 = vadd.f32 %v385, %v404
    %406 = vdwg.mxu0
    %407 = vmatpush.msra.mxu0 %v126
    %408 = vmatpush.msra.mxu0 %v123
    %409 = vmatpush.msra.mxu0 %v120
    %410 = vmatpush.msra.mxu0 %v117
    %411 = vmatpush.msra.mxu0 %v114
    %412 = vmatpush.msra.mxu0 %v111
    %413 = vmatpush.msra.mxu0 %v108
    %414 = vmatpush.msra.mxu0 %v105
    %415 = vmatpush.msra.mxu0 %v102
    %416 = vmatpush.msra.mxu0 %v99
    %417 = vmatpush.msra.mxu0 %v96
    %418 = vmatpush.msra.mxu0 %v93
    %419 = vmatpush.msra.mxu0 %v90
    %420 = vmatpush.msra.mxu0 %v87
    %421 = vmatpush.msra.mxu0 %v84
    %422 = vmatpush.msra.mxu0 %v81
    %423 = vmatmul.f32.gmra.mxu0 %v74
    %v424 = vpop.f32.mrf.mxu0
    %v425 = vadd.f32 %v298, %v424
    %426 = vdwg.mxu0
    %427 = vmatpush.msra.mxu0 %v174
    %428 = vmatpush.msra.mxu0 %v171
    %429 = vmatpush.msra.mxu0 %v168
    %430 = vmatpush.msra.mxu0 %v165
    %431 = vmatpush.msra.mxu0 %v162
    %432 = vmatpush.msra.mxu0 %v159
    %433 = vmatpush.msra.mxu0 %v156
    %434 = vmatpush.msra.mxu0 %v153
    %435 = vmatpush.msra.mxu0 %v150
    %436 = vmatpush.msra.mxu0 %v147
    %437 = vmatpush.msra.mxu0 %v144
    %438 = vmatpush.msra.mxu0 %v141
    %439 = vmatpush.msra.mxu0 %v138
    %440 = vmatpush.msra.mxu0 %v135
    %441 = vmatpush.msra.mxu0 %v132
    %442 = vmatpush.msra.mxu0 %v129
    %443 = vmatmul.f32.gmra.mxu0 %v75
    %v444 = vpop.f32.mrf.mxu0
    %v445 = vadd.f32 %v425, %v444
    %446 = vdwg.mxu0
    %447 = vmatpush.msra.mxu0 %v222
    %448 = vmatpush.msra.mxu0 %v219
    %449 = vmatpush.msra.mxu0 %v216
    %450 = vmatpush.msra.mxu0 %v213
    %451 = vmatpush.msra.mxu0 %v210
    %452 = vmatpush.msra.mxu0 %v207
    %453 = vmatpush.msra.mxu0 %v204
    %454 = vmatpush.msra.mxu0 %v201
    %455 = vmatpush.msra.mxu0 %v198
    %456 = vmatpush.msra.mxu0 %v195
    %457 = vmatpush.msra.mxu0 %v192
    %458 = vmatpush.msra.mxu0 %v189
    %459 = vmatpush.msra.mxu0 %v186
    %460 = vmatpush.msra.mxu0 %v183
    %461 = vmatpush.msra.mxu0 %v180
    %462 = vmatpush.msra.mxu0 %v177
    %463 = vmatmul.f32.gmra.mxu0 %v76
    %v464 = vpop.f32.mrf.mxu0
    %v465 = vadd.f32 %v445, %v464
    %466 = vdwg.mxu0
    %467 = vmatpush.msra.mxu0 %v270
    %468 = vmatpush.msra.mxu0 %v267
    %469 = vmatpush.msra.mxu0 %v264
    %470 = vmatpush.msra.mxu0 %v261
    %471 = vmatpush.msra.mxu0 %v258
    %472 = vmatpush.msra.mxu0 %v255
    %473 = vmatpush.msra.mxu0 %v252
    %474 = vmatpush.msra.mxu0 %v249
    %475 = vmatpush.msra.mxu0 %v246
    %476 = vmatpush.msra.mxu0 %v243
    %477 = vmatpush.msra.mxu0 %v240
    %478 = vmatpush.msra.mxu0 %v237
    %479 = vmatpush.msra.mxu0 %v234
    %480 = vmatpush.msra.mxu0 %v231
    %481 = vmatpush.msra.mxu0 %v228
    %482 = vmatpush.msra.mxu0 %v225
    %483 = vmatmul.f32.gmra.mxu0 %v77
    %v484 = vpop.f32.mrf.mxu0
    %v485 = vadd.f32 %v465, %v484
    %486 = vdwg.mxu0
    %487 = vmatpush.msra.mxu0 0.0
    %488 = vmatpush.msra.mxu0 0.0
    %489 = vmatpush.msra.mxu0 0.0
    %490 = vmatpush.msra.mxu0 0.0
    %491 = vmatpush.msra.mxu0 0.0
    %492 = vmatpush.msra.mxu0 0.0
    %493 = vmatpush.msra.mxu0 0.0
    %494 = vmatpush.msra.mxu0 0.0
    %495 = vmatpush.msra.mxu0 %v294
    %496 = vmatpush.msra.mxu0 %v291
    %497 = vmatpush.msra.mxu0 %v288
    %498 = vmatpush.msra.mxu0 %v285
    %499 = vmatpush.msra.mxu0 %v282
    %500 = vmatpush.msra.mxu0 %v279
    %501 = vmatpush.msra.mxu0 %v276
    %502 = vmatpush.msra.mxu0 %v273
    %503 = vmatmul.f32.gmra.mxu0 %v305
    %v504 = vpop.f32.mrf.mxu0
    %v505 = vadd.f32 %v485, %v504
    %506 = vdwg.mxu0
    %507 = vmatpush.msra.mxu0 %v127
    %508 = vmatpush.msra.mxu0 %v124
    %509 = vmatpush.msra.mxu0 %v121
    %510 = vmatpush.msra.mxu0 %v118
    %511 = vmatpush.msra.mxu0 %v115
    %512 = vmatpush.msra.mxu0 %v112
    %513 = vmatpush.msra.mxu0 %v109
    %514 = vmatpush.msra.mxu0 %v106
    %515 = vmatpush.msra.mxu0 %v103
    %516 = vmatpush.msra.mxu0 %v100
    %517 = vmatpush.msra.mxu0 %v97
    %518 = vmatpush.msra.mxu0 %v94
    %519 = vmatpush.msra.mxu0 %v91
    %520 = vmatpush.msra.mxu0 %v88
    %521 = vmatpush.msra.mxu0 %v85
    %522 = vmatpush.msra.mxu0 %v82
    %523 = vmatmul.f32.gmra.mxu0 %v74
    %v524 = vpop.f32.mrf.mxu0
    %v525 = vadd.f32 %v299, %v524
    %526 = vdwg.mxu0
    %527 = vmatpush.msra.mxu0 %v175
    %528 = vmatpush.msra.mxu0 %v172
    %529 = vmatpush.msra.mxu0 %v169
    %530 = vmatpush.msra.mxu0 %v166
    %531 = vmatpush.msra.mxu0 %v163
    %532 = vmatpush.msra.mxu0 %v160
    %533 = vmatpush.msra.mxu0 %v157
    %534 = vmatpush.msra.mxu0 %v154
    %535 = vmatpush.msra.mxu0 %v151
    %536 = vmatpush.msra.mxu0 %v148
    %537 = vmatpush.msra.mxu0 %v145
    %538 = vmatpush.msra.mxu0 %v142
    %539 = vmatpush.msra.mxu0 %v139
    %540 = vmatpush.msra.mxu0 %v136
    %541 = vmatpush.msra.mxu0 %v133
    %542 = vmatpush.msra.mxu0 %v130
    %543 = vmatmul.f32.gmra.mxu0 %v75
    %v544 = vpop.f32.mrf.mxu0
    %v545 = vadd.f32 %v525, %v544
    %546 = vdwg.mxu0
    %547 = vmatpush.msra.mxu0 %v223
    %548 = vmatpush.msra.mxu0 %v220
    %549 = vmatpush.msra.mxu0 %v217
    %550 = vmatpush.msra.mxu0 %v214
    %551 = vmatpush.msra.mxu0 %v211
    %552 = vmatpush.msra.mxu0 %v208
    %553 = vmatpush.msra.mxu0 %v205
    %554 = vmatpush.msra.mxu0 %v202
    %555 = vmatpush.msra.mxu0 %v199
    %556 = vmatpush.msra.mxu0 %v196
    %557 = vmatpush.msra.mxu0 %v193
    %558 = vmatpush.msra.mxu0 %v190
    %559 = vmatpush.msra.mxu0 %v187
    %560 = vmatpush.msra.mxu0 %v184
    %561 = vmatpush.msra.mxu0 %v181
    %562 = vmatpush.msra.mxu0 %v178
    %563 = vmatmul.f32.gmra.mxu0 %v76
    %v564 = vpop.f32.mrf.mxu0
    %v565 = vadd.f32 %v545, %v564
    %566 = vdwg.mxu0
    %567 = vmatpush.msra.mxu0 %v271
    %568 = vmatpush.msra.mxu0 %v268
    %569 = vmatpush.msra.mxu0 %v265
    %570 = vmatpush.msra.mxu0 %v262
    %571 = vmatpush.msra.mxu0 %v259
    %572 = vmatpush.msra.mxu0 %v256
    %573 = vmatpush.msra.mxu0 %v253
    %574 = vmatpush.msra.mxu0 %v250
    %575 = vmatpush.msra.mxu0 %v247
    %576 = vmatpush.msra.mxu0 %v244
    %577 = vmatpush.msra.mxu0 %v241
    %578 = vmatpush.msra.mxu0 %v238
    %579 = vmatpush.msra.mxu0 %v235
    %580 = vmatpush.msra.mxu0 %v232
    %581 = vmatpush.msra.mxu0 %v229
    %582 = vmatpush.msra.mxu0 %v226
    %583 = vmatmul.f32.gmra.mxu0 %v77
    %v584 = vpop.f32.mrf.mxu0
    %v585 = vadd.f32 %v565, %v584
    %586 = vdwg.mxu0
    %587 = vmatpush.msra.mxu0 0.0
    %588 = vmatpush.msra.mxu0 0.0
    %589 = vmatpush.msra.mxu0 0.0
    %590 = vmatpush.msra.mxu0 0.0
    %591 = vmatpush.msra.mxu0 0.0
    %592 = vmatpush.msra.mxu0 0.0
    %593 = vmatpush.msra.mxu0 0.0
    %594 = vmatpush.msra.mxu0 0.0
    %595 = vmatpush.msra.mxu0 %v295
    %596 = vmatpush.msra.mxu0 %v292
    %597 = vmatpush.msra.mxu0 %v289
    %598 = vmatpush.msra.mxu0 %v286
    %599 = vmatpush.msra.mxu0 %v283
    %600 = vmatpush.msra.mxu0 %v280
    %601 = vmatpush.msra.mxu0 %v277
    %602 = vmatpush.msra.mxu0 %v274
    %603 = vmatmul.f32.gmra.mxu0 %v305
    %v604 = vpop.f32.mrf.mxu0
    %v605 = vadd.f32 %v585, %v604
    %606 = vdwg.mxu0
    %v607 = vmax.f32 %v405, 0.0
    %v608 = vmax.f32 %v505, 0.0
    %v609 = vmax.f32 %v605, 0.0
    %v610 = vld [vmem:[%s5 + $0x3] sm:$0x1]
    %v611 = vld [vmem:[%s2] sm:$0xff]
    %v612 = vld [vmem:[%s2 + $0x8] sm:$0xff]
    %v613 = vld [vmem:[%s2 + $0x10] sm:$0xff]
    %v614 = vld [vmem:[%s2 + $0x18] sm:$0xff]
    %v615 = vld [vmem:[%s2 + $0x20] sm:$0xff]
    %v616 = vld [vmem:[%s2 + $0x28] sm:$0xff]
    %v617 = vld [vmem:[%s2 + $0x30] sm:$0xff]
    %v618 = vld [vmem:[%s2 + $0x38] sm:$0xff]
    %v619 = vld [vmem:[%s2 + $0x40] sm:$0xff]
    %v620 = vld [vmem:[%s2 + $0x48] sm:$0xff]
    %v621 = vld [vmem:[%s2 + $0x50] sm:$0xff]
    %v622 = vld [vmem:[%s2 + $0x58] sm:$0xff]
    %v623 = vld [vmem:[%s2 + $0x60] sm:$0xff]
    %v624 = vld [vmem:[%s2 + $0x68] sm:$0xff]
    %v625 = vld [vmem:[%s2 + $0x70] sm:$0xff]
    %v626 = vld [vmem:[%s2 + $0x78] sm:$0xff]
    %v627 = vld [vmem:[%s2 + $0x80] sm:$0xff]
    %v628 = vld [vmem:[%s2 + $0x88] sm:$0xff]
    %v629 = vld [vmem:[%s2 + $0x90] sm:$0xff]
    %v630 = vld [vmem:[%s2 + $0x98] sm:$0xff]
    %v631 = vld [vmem:[%s2 + $0xa0] sm:$0xff]
    %v632 = vld [vmem:[%s2 + $0xa8] sm:$0xff]
    %v633 = vld [vmem:[%s2 + $0xb0] sm:$0xff]
    %v634 = vld [vmem:[%s2 + $0xb8] sm:$0xff]
    %v635 = vld [vmem:[%s2 + $0xc0] sm:$0xff]
    %v636 = vld [vmem:[%s2 + $0xc8] sm:$0xff]
    %v637 = vld [vmem:[%s2 + $0xd0] sm:$0xff]
    %v638 = vld [vmem:[%s2 + $0xd8] sm:$0xff]
    %v639 = vld [vmem:[%s2 + $0xe0] sm:$0xff]
    %v640 = vld [vmem:[%s2 + $0xe8] sm:$0xff]
    %v641 = vld [vmem:[%s2 + $0xf0] sm:$0xff]
    %v642 = vld [vmem:[%s2 + $0xf8] sm:$0xff]
    %v643 = vld [vmem:[%s2 + $0x100] sm:$0xff]
    %v644 = vld [vmem:[%s2 + $0x108] sm:$0xff]
    %v645 = vld [vmem:[%s2 + $0x110] sm:$0xff]
    %v646 = vld [vmem:[%s2 + $0x118] sm:$0xff]
    %v647 = vld [vmem:[%s2 + $0x120] sm:$0xff]
    %v648 = vld [vmem:[%s2 + $0x128] sm:$0xff]
    %v649 = vld [vmem:[%s2 + $0x130] sm:$0xff]
    %v650 = vld [vmem:[%s2 + $0x138] sm:$0xff]
    %v651 = vld [vmem:[%s2 + $0x140] sm:$0xff]
    %v652 = vld [vmem:[%s2 + $0x148] sm:$0xff]
    %v653 = vld [vmem:[%s2 + $0x150] sm:$0xff]
    %v654 = vld [vmem:[%s2 + $0x158] sm:$0xff]
    %v655 = vld [vmem:[%s2 + $0x160] sm:$0xff]
    %v656 = vld [vmem:[%s2 + $0x168] sm:$0xff]
    %v657 = vld [vmem:[%s2 + $0x170] sm:$0xff]
    %v658 = vld [vmem:[%s2 + $0x178] sm:$0xff]
    %v660 = vperm.slane %v610, 0
    %662 = vmatpush.msra.mxu0 %v626
    %663 = vmatpush.msra.mxu0 %v625
    %664 = vmatpush.msra.mxu0 %v624
    %665 = vmatpush.msra.mxu0 %v623
    %666 = vmatpush.msra.mxu0 %v622
    %667 = vmatpush.msra.mxu0 %v621
    %668 = vmatpush.msra.mxu0 %v620
    %669 = vmatpush.msra.mxu0 %v619
    %670 = vmatpush.msra.mxu0 %v618
    %671 = vmatpush.msra.mxu0 %v617
    %672 = vmatpush.msra.mxu0 %v616
    %673 = vmatpush.msra.mxu0 %v615
    %674 = vmatpush.msra.mxu0 %v614
    %675 = vmatpush.msra.mxu0 %v613
    %676 = vmatpush.msra.mxu0 %v612
    %677 = vmatpush.msra.mxu0 %v611
    %678 = vmatmul.f32.gmra.mxu0 %v607
    %v679 = vpop.f32.mrf.mxu0
    %v680 = vadd.f32 %v660, %v679
    %681 = vdwg.mxu0
    %682 = vmatpush.msra.mxu0 %v642
    %683 = vmatpush.msra.mxu0 %v641
    %684 = vmatpush.msra.mxu0 %v640
    %685 = vmatpush.msra.mxu0 %v639
    %686 = vmatpush.msra.mxu0 %v638
    %687 = vmatpush.msra.mxu0 %v637
    %688 = vmatpush.msra.mxu0 %v636
    %689 = vmatpush.msra.mxu0 %v635
    %690 = vmatpush.msra.mxu0 %v634
    %691 = vmatpush.msra.mxu0 %v633
    %692 = vmatpush.msra.mxu0 %v632
    %693 = vmatpush.msra.mxu0 %v631
    %694 = vmatpush.msra.mxu0 %v630
    %695 = vmatpush.msra.mxu0 %v629
    %696 = vmatpush.msra.mxu0 %v628
    %697 = vmatpush.msra.mxu0 %v627
    %698 = vmatmul.f32.gmra.mxu0 %v608
    %v699 = vpop.f32.mrf.mxu0
    %v700 = vadd.f32 %v680, %v699
    %701 = vdwg.mxu0
    %702 = vmatpush.msra.mxu0 %v658
    %703 = vmatpush.msra.mxu0 %v657
    %704 = vmatpush.msra.mxu0 %v656
    %705 = vmatpush.msra.mxu0 %v655
    %706 = vmatpush.msra.mxu0 %v654
    %707 = vmatpush.msra.mxu0 %v653
    %708 = vmatpush.msra.mxu0 %v652
    %709 = vmatpush.msra.mxu0 %v651
    %710 = vmatpush.msra.mxu0 %v650
    %711 = vmatpush.msra.mxu0 %v649
    %712 = vmatpush.msra.mxu0 %v648
    %713 = vmatpush.msra.mxu0 %v647
    %714 = vmatpush.msra.mxu0 %v646
    %715 = vmatpush.msra.mxu0 %v645
    %716 = vmatpush.msra.mxu0 %v644
    %717 = vmatpush.msra.mxu0 %v643
    %718 = vmatmul.f32.gmra.mxu0 %v609
    %v719 = vpop.f32.mrf.mxu0
    %v720 = vadd.f32 %v700, %v719
    %721 = vdwg.mxu0
    %v722 = vmax.f32 %v720, 0.0
    %v723 = vld [vmem:[%s5 + $0x4] sm:$0x3]
    %v724 = vld [vmem:[#allocation5] sm:$0xff]
    %v725 = vld [vmem:[#allocation5 + $0x8] sm:$0xff]
    %v726 = vld [vmem:[#allocation5 + $0x10] sm:$0xff]
    %v727 = vld [vmem:[#allocation5 + $0x18] sm:$0xff]
    %v728 = vld [vmem:[#allocation5 + $0x20] sm:$0xff]
    %v729 = vld [vmem:[#allocation5 + $0x28] sm:$0xff]
    %v730 = vld [vmem:[#allocation5 + $0x30] sm:$0xff]
    %v731 = vld [vmem:[#allocation5 + $0x38] sm:$0xff]
    %v732 = vld [vmem:[#allocation5 + $0x40] sm:$0xff]
    %v733 = vld [vmem:[#allocation5 + $0x48] sm:$0xff]
    %v734 = vld [vmem:[#allocation5 + $0x50] sm:$0xff]
    %v735 = vld [vmem:[#allocation5 + $0x58] sm:$0xff]
    %v736 = vld [vmem:[#allocation5 + $0x60] sm:$0xff]
    %v737 = vld [vmem:[#allocation5 + $0x68] sm:$0xff]
    %v738 = vld [vmem:[#allocation5 + $0x70] sm:$0xff]
    %v739 = vld [vmem:[#allocation5 + $0x78] sm:$0xff]
    %v740 = vld [vmem:[#allocation5 + $0x80] sm:$0xff]
    %v741 = vld [vmem:[#allocation5 + $0x88] sm:$0xff]
    %v742 = vld [vmem:[#allocation5 + $0x90] sm:$0xff]
    %v743 = vld [vmem:[#allocation5 + $0x98] sm:$0xff]
    %v744 = vld [vmem:[#allocation5 + $0xa0] sm:$0xff]
    %v745 = vld [vmem:[#allocation5 + $0xa8] sm:$0xff]
    %v746 = vld [vmem:[#allocation5 + $0xb0] sm:$0xff]
    %v747 = vld [vmem:[#allocation5 + $0xb8] sm:$0xff]
    %v748 = vld [vmem:[#allocation5 + $0xc0] sm:$0xff]
    %v749 = vld [vmem:[#allocation5 + $0xc8] sm:$0xff]
    %v750 = vld [vmem:[#allocation5 + $0xd0] sm:$0xff]
    %v751 = vld [vmem:[#allocation5 + $0xd8] sm:$0xff]
    %v752 = vld [vmem:[#allocation5 + $0xe0] sm:$0xff]
    %v753 = vld [vmem:[#allocation5 + $0xe8] sm:$0xff]
    %v754 = vld [vmem:[#allocation5 + $0xf0] sm:$0xff]
    %v755 = vld [vmem:[#allocation5 + $0xf8] sm:$0xff]
    %v757 = vperm.slane %v723, 0
    %v758 = vperm.slane %v723, 1
    %761 = vmatpush.msra.mxu0 %v754
    %762 = vmatpush.msra.mxu0 %v752
    %763 = vmatpush.msra.mxu0 %v750
    %764 = vmatpush.msra.mxu0 %v748
    %765 = vmatpush.msra.mxu0 %v746
    %766 = vmatpush.msra.mxu0 %v744
    %767 = vmatpush.msra.mxu0 %v742
    %768 = vmatpush.msra.mxu0 %v740
    %769 = vmatpush.msra.mxu0 %v738
    %770 = vmatpush.msra.mxu0 %v736
    %771 = vmatpush.msra.mxu0 %v734
    %772 = vmatpush.msra.mxu0 %v732
    %773 = vmatpush.msra.mxu0 %v730
    %774 = vmatpush.msra.mxu0 %v728
    %775 = vmatpush.msra.mxu0 %v726
    %776 = vmatpush.msra.mxu0 %v724
    %777 = vmatmul.f32.gmra.mxu0 %v722
    %v778 = vpop.f32.mrf.mxu0
    %v779 = vadd.f32 %v757, %v778
    %780 = vdwg.mxu0
    %781 = vmatpush.msra.mxu0 %v755
    %782 = vmatpush.msra.mxu0 %v753
    %783 = vmatpush.msra.mxu0 %v751
    %784 = vmatpush.msra.mxu0 %v749
    %785 = vmatpush.msra.mxu0 %v747
    %786 = vmatpush.msra.mxu0 %v745
    %787 = vmatpush.msra.mxu0 %v743
    %788 = vmatpush.msra.mxu0 %v741
    %789 = vmatpush.msra.mxu0 %v739
    %790 = vmatpush.msra.mxu0 %v737
    %791 = vmatpush.msra.mxu0 %v735
    %792 = vmatpush.msra.mxu0 %v733
    %793 = vmatpush.msra.mxu0 %v731
    %794 = vmatpush.msra.mxu0 %v729
    %795 = vmatpush.msra.mxu0 %v727
    %796 = vmatpush.msra.mxu0 %v725
    %797 = vmatmul.f32.gmra.mxu0 %v722
    %v798 = vpop.f32.mrf.mxu0
    %v799 = vadd.f32 %v758, %v798
    %800 = vdwg.mxu0
    %v801 = vmax.f32 %v779, 0.0
    %v802 = vmax.f32 %v799, 0.0
    %v803 = vld [vmem:[%s5 + $0x6] sm:$0x1]
    %v804 = vld [vmem:[#allocation7] sm:$0xff]
    %v805 = vld [vmem:[#allocation7 + $0x8] sm:$0xff]
    %v806 = vld [vmem:[#allocation7 + $0x10] sm:$0xff]
    %v807 = vld [vmem:[#allocation7 + $0x18] sm:$0xff]
    %v808 = vld [vmem:[#allocation7 + $0x20] sm:$0xff]
    %v809 = vld [vmem:[#allocation7 + $0x28] sm:$0xff]
    %v810 = vld [vmem:[#allocation7 + $0x30] sm:$0xff]
    %v811 = vld [vmem:[#allocation7 + $0x38] sm:$0xff]
    %v812 = vld [vmem:[#allocation7 + $0x40] sm:$0xff]
    %v813 = vld [vmem:[#allocation7 + $0x48] sm:$0xff]
    %v814 = vld [vmem:[#allocation7 + $0x50] sm:$0xff]
    %v815 = vld [vmem:[#allocation7 + $0x58] sm:$0xff]
    %v816 = vld [vmem:[#allocation7 + $0x60] sm:$0xff]
    %v817 = vld [vmem:[#allocation7 + $0x68] sm:$0xff]
    %v818 = vld [vmem:[#allocation7 + $0x70] sm:$0xff]
    %v819 = vld [vmem:[#allocation7 + $0x78] sm:$0xff]
    %v820 = vld [vmem:[#allocation7 + $0x80] sm:$0xff]
    %v821 = vld [vmem:[#allocation7 + $0x88] sm:$0xff]
    %v822 = vld [vmem:[#allocation7 + $0x90] sm:$0xff]
    %v823 = vld [vmem:[#allocation7 + $0x98] sm:$0xff]
    %v824 = vld [vmem:[#allocation7 + $0xa0] sm:$0xff]
    %v825 = vld [vmem:[#allocation7 + $0xa8] sm:$0xff]
    %v826 = vld [vmem:[#allocation7 + $0xb0] sm:$0xff]
    %v827 = vld [vmem:[#allocation7 + $0xb8] sm:$0xff]
    %v828 = vld [vmem:[#allocation7 + $0xc0] sm:$0xff]
    %v829 = vld [vmem:[#allocation7 + $0xc8] sm:$0xff]
    %v830 = vld [vmem:[#allocation7 + $0xd0] sm:$0xff]
    %v831 = vld [vmem:[#allocation7 + $0xd8] sm:$0xff]
    %v832 = vld [vmem:[#allocation7 + $0xe0] sm:$0xff]
    %v833 = vld [vmem:[#allocation7 + $0xe8] sm:$0xff]
    %v834 = vld [vmem:[#allocation7 + $0xf0] sm:$0xff]
    %v835 = vld [vmem:[#allocation7 + $0xf8] sm:$0xff]
    %v837 = vperm.slane %v803, 0
    %839 = vmatpush.msra.mxu0 %v819
    %840 = vmatpush.msra.mxu0 %v818
    %841 = vmatpush.msra.mxu0 %v817
    %842 = vmatpush.msra.mxu0 %v816
    %843 = vmatpush.msra.mxu0 %v815
    %844 = vmatpush.msra.mxu0 %v814
    %845 = vmatpush.msra.mxu0 %v813
    %846 = vmatpush.msra.mxu0 %v812
    %847 = vmatpush.msra.mxu0 %v811
    %848 = vmatpush.msra.mxu0 %v810
    %849 = vmatpush.msra.mxu0 %v809
    %850 = vmatpush.msra.mxu0 %v808
    %851 = vmatpush.msra.mxu0 %v807
    %852 = vmatpush.msra.mxu0 %v806
    %853 = vmatpush.msra.mxu0 %v805
    %854 = vmatpush.msra.mxu0 %v804
    %855 = vmatmul.f32.gmra.mxu0 %v801
    %v856 = vpop.f32.mrf.mxu0
    %v857 = vadd.f32 %v837, %v856
    %858 = vdwg.mxu0
    %859 = vmatpush.msra.mxu0 %v835
    %860 = vmatpush.msra.mxu0 %v834
    %861 = vmatpush.msra.mxu0 %v833
    %862 = vmatpush.msra.mxu0 %v832
    %863 = vmatpush.msra.mxu0 %v831
    %864 = vmatpush.msra.mxu0 %v830
    %865 = vmatpush.msra.mxu0 %v829
    %866 = vmatpush.msra.mxu0 %v828
    %867 = vmatpush.msra.mxu0 %v827
    %868 = vmatpush.msra.mxu0 %v826
    %869 = vmatpush.msra.mxu0 %v825
    %870 = vmatpush.msra.mxu0 %v824
    %871 = vmatpush.msra.mxu0 %v823
    %872 = vmatpush.msra.mxu0 %v822
    %873 = vmatpush.msra.mxu0 %v821
    %874 = vmatpush.msra.mxu0 %v820
    %875 = vmatmul.f32.gmra.mxu0 %v802
    %v876 = vpop.f32.mrf.mxu0
    %v877 = vadd.f32 %v857, %v876
    %878 = vdwg.mxu0
    %v879 = vmax.f32 %v877, 0.0
    %v880 = vld [vmem:[%s5 + $0x7] sm:$0x1]
    %v882 = vperm.slane %v880, 0
    %v884 = vmul.f32 %v879, %v882
    %885 = vadd.xlane.f32.xlu0 %v884
    %v886 = vpop.xlane.xlu0 %885
    %s887 = sld [smem:[#allocation2]]
    %v888 = vstv %s887
    %v889 = vadd.f32 %v886, %v888
    %v890 = vlaneseq
    %v891 = vand.u32 %v890, 127
    %vm892 = vcmp.eq.s32.totalorder %v891, 32
    %v893 = vsel %vm892, %v889, %v879
    %894 = vst [vmem:[%s7] sm:$0xff] %v893
    // Predicated region
    $region42: #{actor_critic_forward.1} parent=1 // pred_check
      _
    $region43: #{actor_critic_forward.1} parent=1 // pred_check_branch
      %896 = sbr.rel (0) target = $region45
    $region44: #{actor_critic_forward.1} parent=1 // pred_region
      _
    $region45: #{actor_critic_forward.1} parent=1 // pred_fallthru
      _
    // Predicated region
    $region46: #{actor_critic_forward.1} parent=1 // pred_check
      _
    $region47: #{actor_critic_forward.1} parent=1 // pred_check_branch
      %898 = sbr.rel (0) target = $region49
    $region48: #{actor_critic_forward.1} parent=1 // pred_region
      _
    $region49: #{actor_critic_forward.1} parent=1 // pred_fallthru
      _
    %899 = vsyncpa [#allocation4], 1
    %900 = vsyncpa [#allocation6], 1

</llo_original>
